<compile_context>
chip_gen: v6e
topology: v6e:2x2x1
jax: 0.10.0
libtpu: 0.0.40
codegen_flags: <defaults>
</compile_context>

<pallas_src>
import jax
import jax.numpy as jnp
from jax.experimental import pallas as pl
from jax.experimental.pallas import tpu as pltpu


# Per-step input-tile budget.  Pipeline footprint ~= 8x this (double buffer x
# (1 in + 3 out)), i.e. ~8 MiB -- inside every generation's default scoped
# VMEM (v5e 16 MiB, v6e/v7x 32 MiB) with headroom, and large enough to sit on
# the HBM-bandwidth roofline for a copy kernel.
_IN_TILE_BUDGET_BYTES = 1 << 20


def _grayscale_kernel(x_ref, o_ref):
    # x_ref: (Bb, 1, R, L) single input channel tile
    # o_ref: (Bb, 3, R, L) all three output channels
    # Broadcast along the leading channel axis only: the (sublane, lane)
    # layout of the last two dims is untouched, so this is a full-width
    # load followed by three full-width stores of the same vregs.
    o_ref[...] = jnp.broadcast_to(x_ref[...], o_ref.shape)


def _largest_divisor_at_most(total, cap):
    """Largest divisor of `total` that is <= cap (always >= 1)."""
    cap = max(1, min(total, cap))
    for d in range(cap, 0, -1):
        if total % d == 0:
            return d
    return 1


def _pick_row_tile(rows, row_bytes, budget_bytes):
    """Tile length along the second-to-last (sublane) axis.

    Must be a multiple of 8 unless it equals `rows` (full extent is always
    legal).  Prefers an exact divisor of `rows`; otherwise uses a multiple-of-8
    tile with a masked partial trailing block (Pallas masks the overrun).
    """
    if rows * row_bytes <= budget_bytes:
        return rows
    cap = max(8, (budget_bytes // row_bytes) // 8 * 8)
    if cap >= rows:
        return rows
    cand = cap
    while cand >= 8:
        if rows % cand == 0:
            return cand
        cand -= 8
    return cap


def _pick_batch_tile(n, per_item_bytes, budget_bytes):
    """How many batch items per grid step (always an exact divisor of n)."""
    cap = max(1, budget_bytes // max(1, per_item_bytes))
    return _largest_divisor_at_most(n, cap)


def grayscale(img):
    """Broadcast (N, 1, H, W) -> (N, 3, H, W), matching torch `expand`."""
    n, c, h, w = img.shape
    assert c == 1, "Grayscale expects a singleton channel dim (like torch expand)"
    out_c = 3
    hw = h * w
    itemsize = jnp.dtype(img.dtype).itemsize

    if hw % 128 == 0:
        # Lane/sublane-dense path: flatten spatial dims into (rows, 128) so
        # both input and output blocks are dense (8,128) tiles.
        rows, lanes = hw // 128, 128
    else:
        # Fallback: keep (H, W).  W as the full-extent last dim is always
        # legal (stores are masked if W < 128); tile along H so large
        # unaligned images still fit the VMEM budget.
        rows, lanes = h, w

    x = img.reshape(n, 1, rows, lanes)

    row_bytes = lanes * itemsize
    row_tile = _pick_row_tile(rows, row_bytes, _IN_TILE_BUDGET_BYTES)
    per_item_bytes = row_tile * row_bytes
    batch_tile = _pick_batch_tile(n, per_item_bytes, _IN_TILE_BUDGET_BYTES)

    n_row_blocks = pl.cdiv(rows, row_tile)
    n_batch_blocks = n // batch_tile  # batch_tile divides n by construction

    # v7x has 2 TensorCores per chip: make sure a "parallel" grid has >= 2
    # steps when there is anything to split, so one core is not left idle.
    if n_batch_blocks * n_row_blocks == 1:
        if n >= 2:
            batch_tile = _largest_divisor_at_most(n, max(1, n // 2))
            n_batch_blocks = n // batch_tile
        elif rows >= 16:
            row_tile = max(8, ((rows + 1) // 2) // 8 * 8)
            n_row_blocks = pl.cdiv(rows, row_tile)

    out_flat = pl.pallas_call(
        _grayscale_kernel,
        out_shape=jax.ShapeDtypeStruct((n, out_c, rows, lanes), img.dtype),
        grid_spec=pltpu.PrefetchScalarGridSpec(
            num_scalar_prefetch=0,
            grid=(n_batch_blocks, n_row_blocks),
            in_specs=[
                # Read channel 0 of this batch/row tile exactly once.
                pl.BlockSpec((batch_tile, 1, row_tile, lanes),
                             lambda b, r: (b, 0, r, 0)),
            ],
            out_specs=pl.BlockSpec((batch_tile, out_c, row_tile, lanes),
                                   lambda b, r: (b, 0, r, 0)),
        ),
        compiler_params=pltpu.CompilerParams(
            dimension_semantics=("parallel", "parallel"),
        ),
        cost_estimate=pl.CostEstimate(
            flops=0,
            transcendentals=0,
            bytes_accessed=(1 + out_c) * n * hw * itemsize,
        ),
    )(x)

    return out_flat.reshape(n, out_c, h, w)


if __name__ == "__main__":
    key = jax.random.PRNGKey(0)

    # Small NCHW grayscale batch matching the module's expected input:
    # (batch=2, channels=1, H=16, W=16).
    x = jax.random.normal(key, (2, 1, 16, 16), dtype=jnp.float32)
    out = jax.block_until_ready(grayscale(x))
    ref = jnp.broadcast_to(x, (x.shape[0], 3, x.shape[2], x.shape[3]))
    assert out.shape == (2, 3, 16, 16), out.shape
    assert out.dtype == x.dtype
    assert bool(jnp.all(out == ref)), "mismatch vs broadcast reference"

    # Exercise both the lane-dense (128-aligned) path and the unaligned
    # fallback path at small shapes.
    for shape in [(4, 1, 64, 96), (3, 1, 17, 9)]:
        xi = jax.random.normal(jax.random.PRNGKey(1), shape, dtype=jnp.float32)
        oi = jax.block_until_ready(grayscale(xi))
        refi = jnp.broadcast_to(xi, (shape[0], 3, shape[2], shape[3]))
        assert oi.shape == refi.shape and oi.dtype == xi.dtype
        assert bool(jnp.all(oi == refi)), f"mismatch for {shape}"

    print("KERNEL_OK")
</pallas_src>

<mosaic_0001>
module attributes {stable_mosaic.version = 11 : i64} {
  func.func @_grayscale_kernel(%arg0: i32, %arg1: i32, %arg2: memref<1x1x2x128xf32, #tpu.memory_space<vmem>>, %arg3: memref<1x3x2x128xf32, #tpu.memory_space<vmem>>) attributes {dimension_semantics = [#tpu.dimension_semantics<parallel>, #tpu.dimension_semantics<parallel>], iteration_bounds = array<i64: 2, 1>, scalar_prefetch = 0 : i64, scratch_operands = 0 : i64, tpu.core_type = #tpu.core_type<tc>, window_params = [{transform_indices = @transform_0, window_bounds = array<i64: 1, 1, 2, 128>}, {transform_indices = @transform_1, window_bounds = array<i64: 1, 3, 2, 128>}]} {
    %c0 = arith.constant 0 : index
    %c0_0 = arith.constant 0 : index
    %c0_1 = arith.constant 0 : index
    %c0_2 = arith.constant 0 : index
    %0 = vector.load %arg2[%c0, %c0_0, %c0_1, %c0_2] : memref<1x1x2x128xf32, #tpu.memory_space<vmem>>, vector<1x1x2x128xf32>
    %1 = vector.shape_cast %0 : vector<1x1x2x128xf32> to vector<1x1x2x128xf32>
    %2 = vector.broadcast %1 : vector<1x1x2x128xf32> to vector<1x3x2x128xf32>
    %c0_3 = arith.constant 0 : index
    %c0_4 = arith.constant 0 : index
    %c0_5 = arith.constant 0 : index
    %c0_6 = arith.constant 0 : index
    %3 = vector.load %arg3[%c0_3, %c0_4, %c0_5, %c0_6] : memref<1x3x2x128xf32, #tpu.memory_space<vmem>>, vector<1x3x2x128xf32>
    tpu.vector_store %arg3[%c0_3, %c0_4, %c0_5, %c0_6], %2 {strides = array<i32>} : memref<1x3x2x128xf32, #tpu.memory_space<vmem>>, vector<1x3x2x128xf32>,
    return
  }
  func.func @transform_0(%arg0: i32, %arg1: i32) -> (i32, i32, i32, i32) {
    %c0_i32 = arith.constant 0 : i32
    %c0_i32_0 = arith.constant 0 : i32
    %c0_i32_1 = arith.constant 0 : i32
    return %arg0, %c0_i32, %arg1, %c0_i32_0 : i32, i32, i32, i32
  }
  func.func @transform_1(%arg0: i32, %arg1: i32) -> (i32, i32, i32, i32) {
    %c0_i32 = arith.constant 0 : i32
    %c0_i32_0 = arith.constant 0 : i32
    %c0_i32_1 = arith.constant 0 : i32
    return %arg0, %c0_i32, %arg1, %c0_i32_0 : i32, i32, i32, i32
  }
}

</mosaic_0001>

<llo_original>
// kernel: tpu_custom_call.1
$region0: #{tpu_custom_call.1}
  #allocation0 [shape = 'u32[]', space=smem, size = 0x4, offset = 0x4, fixed_abs, tag = 'smem constant byte address 0x4 - core index']
  #allocation1 [shape = 'u32[144,128]{1,0:T(1,128)}', space=vmem, size = 0x12000, scoped, tag = 'internal scratch']
  %s0 = inlined_call_operand.hbm [shape: f32[2,1,2,128], index: 0, kind: input, shape index: {}]
  %s1 = inlined_call_operand.hbm [shape: f32[2,3,2,128], index: 1, kind: output, shape index: {}]
  %s2 = sld [smem:[#allocation0]]
  $region41: #{tpu_custom_call.1} parent=0
    _
  %s4 = ssub.s32 1, %s2
  %s5 = scalar_select 0, %s4, %s2
  $region1: #{tpu_custom_call.1} parent=0
    #allocation2 [shape = 'u8[2048]{0}', space=vmem, size = 0x800, scoped, tag = 'input window, operand 0']
    #allocation3 [shape = 's32[2]{0}', space=sflag, size = 0x8, scoped, tag = 'scoped memory for tpu_custom_call.1']
    #allocation4 [shape = 's32[2]{0}', space=sflag, size = 0x8, scoped, tag = 'scoped memory for tpu_custom_call.1']
    #allocation5 [shape = 'u8[6144]{0}', space=vmem, size = 0x1800, scoped, tag = 'output window, operand 0']
    %6 = vsyncpa [#allocation3], 0
    %s7 = scalar_lea.sflag [#allocation3], 1
    %8 = vsyncpa %s7, 0
    %9 = vsyncpa [#allocation4], 0
    %s10 = scalar_lea.sflag [#allocation4], 1
    %11 = vsyncpa %s10, 0
    loop: start=0, step=1, limit=4
    $region2: #{tpu_custom_call.1} parent=1 // loop_pre_header
      _
    $region3: #{tpu_custom_call.1} parent=1 // loop_header
      %s13 = sphi 0, %s17
      %p14 = scmp.ge.s32.totalorder %s13, 4
      %s20 = sphi 0, %s32
      %s21 = sphi 0, %s28
      %s22 = sphi 0, %s20
      %s23 = sphi 0, %s21
      %s24 = sphi 0, %s22
      %s25 = sphi 0, %s23
      %s37 = sphi 0, %s39
      %s40 = sphi 0, %s37
      %s41 = sphi 0, %s40
      %s57 = sphi 0, %s41
      %s65 = sphi 0, %s67
      %s68 = sphi 0, %s65
      %s69 = sphi 0, %s68
      %s85 = sphi 0, %s69
    $region4: #{tpu_custom_call.1} parent=1 // loop_header_branch
      %16 = sbr.rel (%p14) target = $region8
    $region5: #{tpu_custom_call.1} parent=1 // loop_body
      %s18 = ssub.s32 %s13, 1
      %s19 = ssub.s32 %s13, 2
      %s26 = sadd.s32 1, %s21
      %p27 = scmp.ge.s32.totalorder %s26, 1
      %s28 = scalar_select %p27, 0, %s26
      %s29 = sadd.s32 1, %s20
      %s30 = scalar_select %p27, %s29, %s20
      %p31 = scmp.ge.s32.totalorder %s30, 2
      %s32 = scalar_select %p31, 0, %s30
      %s33 = ssub.s32 %s20, %s32
      %s34 = ssub.s32 %s21, %s28
      %s35 = sor.u32 %s33, %s34
      %p36 = scmp.eq.s32.totalorder %s35, 0
      %s38 = sadd.s32 %s37, 1
      %s39 = scalar_select %p36, %s37, %s38
      %p42 = pneg %p36
      %p43 = scmp.eq.s32.totalorder %s13, 1
      %p44 = por %p42, %p43
      %p45 = scmp.ne.s32.totalorder %s37, %s40
      %p46 = scmp.eq.s32.totalorder %s13, 0
      %p47 = por %p45, %p46
      %p48 = scmp.ne.s32.totalorder %s37, %s40
      %p49 = scmp.eq.s32.totalorder %s18, 1
      %p50 = por %p48, %p49
      %p51 = scmp.ne.s32.totalorder %s40, %s41
      %p52 = scmp.eq.s32.totalorder %s18, 0
      %p53 = por %p51, %p52
      %p54 = scmp.ne.s32.totalorder %s40, %s41
      %p55 = scmp.eq.s32.totalorder %s19, 1
      %p56 = por %p54, %p55
      %p58 = scmp.ne.s32.totalorder %s41, %s57
      %p59 = scmp.eq.s32.totalorder %s19, 0
      %p60 = por %p58, %p59
      %s61 = ssub.s32 %s20, %s32
      %s62 = ssub.s32 %s21, %s28
      %s63 = sor.u32 %s61, %s62
      %p64 = scmp.eq.s32.totalorder %s63, 0
      %s66 = sadd.s32 %s65, 1
      %s67 = scalar_select %p64, %s65, %s66
      %p70 = pneg %p64
      %p71 = scmp.eq.s32.totalorder %s13, 1
      %p72 = por %p70, %p71
      %p73 = scmp.ne.s32.totalorder %s65, %s68
      %p74 = scmp.eq.s32.totalorder %s13, 0
      %p75 = por %p73, %p74
      %p76 = scmp.ne.s32.totalorder %s65, %s68
      %p77 = scmp.eq.s32.totalorder %s18, 1
      %p78 = por %p76, %p77
      %p79 = scmp.ne.s32.totalorder %s68, %s69
      %p80 = scmp.eq.s32.totalorder %s18, 0
      %p81 = por %p79, %p80
      %p82 = scmp.ne.s32.totalorder %s68, %s69
      %p83 = scmp.eq.s32.totalorder %s19, 1
      %p84 = por %p82, %p83
      %p86 = scmp.ne.s32.totalorder %s69, %s85
      %p87 = scmp.eq.s32.totalorder %s19, 0
      %p88 = por %p86, %p87
      %p89 = scmp.le.s32.totalorder 1, %s13
      %p90 = scmp.lt.s32.totalorder %s13, 3
      %p91 = pnand %p89, %p90
      %p92 = pneg %p91
      // Predicated region
      $region9: #{tpu_custom_call.1} parent=5 // pred_check
        _
      $region10: #{tpu_custom_call.1} parent=5 // pred_check_branch
        %94 = sbr.rel (%p91) target = $region12
      $region11: #{tpu_custom_call.1} parent=5 // pred_region
        %s95 = ssub.s32 %s13, 1
      $region12: #{tpu_custom_call.1} parent=5 // pred_fallthru
        _
      %p96 = scmp.lt.s32.totalorder %s13, 2
      // Predicated region
      $region13: #{tpu_custom_call.1} parent=5 // pred_check
        %p97 = pneg %p96
      $region14: #{tpu_custom_call.1} parent=5 // pred_check_branch
        %99 = sbr.rel (%p97) target = $region16
      $region15: #{tpu_custom_call.1} parent=5 // pred_region
        // Predicated region
        $region17: #{tpu_custom_call.1} parent=15 // pred_check
          %p100 = pneg %p47
        $region18: #{tpu_custom_call.1} parent=15 // pred_check_branch
          %102 = sbr.rel (%p100) target = $region20
        $region19: #{tpu_custom_call.1} parent=15 // pred_region
          %s103 = sand.u32 %s37, 1
          %s104 = scalar_lea.sflag [#allocation3], %s103
          %s105 = sand.u32 %s37, 1
          %s106 = smul.addr %s105, 2
          %s107 = scalar_lea.vmem [#allocation2], %s106
          %s109 = ssub.s32 32, 32
          %110 = vsyncadd %s104, %s109
          %s111 = sadd.s32 %s21, %s20
          %s112 = smul.addr %s111, 32
          %s113 = scalar_lea.hbm %s0, %s112
          %s115 = sshll.u32 %s107, 4
          %s116 = int_to_ptr.vmem [resolvable:$true] %s115
          %118 = dma.hbm_to_vmem [thread:$0]  %s113, 32, %s116, %s104
        $region20: #{tpu_custom_call.1} parent=15 // pred_fallthru
          _
      $region16: #{tpu_custom_call.1} parent=5 // pred_fallthru
        _
      %p119 = scmp.le.s32.totalorder 1, %s13
      %p120 = scmp.lt.s32.totalorder %s13, 3
      %p121 = pnand %p119, %p120
      %p122 = pneg %p121
      // Predicated region
      $region21: #{tpu_custom_call.1} parent=5 // pred_check
        _
      $region22: #{tpu_custom_call.1} parent=5 // pred_check_branch
        %124 = sbr.rel (%p121) target = $region24
      $region23: #{tpu_custom_call.1} parent=5 // pred_region
        %s125 = ssub.s32 %s13, 1
        %s126 = sand.u32 %s40, 1
        %s127 = scalar_lea.sflag [#allocation3], %s126
        %s128 = sand.u32 %s40, 1
        %s129 = smul.addr %s128, 2
        %s130 = scalar_lea.vmem [#allocation2], %s129
        // Predicated region
        $region25: #{tpu_custom_call.1} parent=23 // pred_check
          %p131 = pneg %p53
        $region26: #{tpu_custom_call.1} parent=23 // pred_check_branch
          %133 = sbr.rel (%p131) target = $region28
        $region27: #{tpu_custom_call.1} parent=23 // pred_region
          %134 = dma.done %s127, 32
        $region28: #{tpu_custom_call.1} parent=23 // pred_fallthru
          _
        %s135 = sand.u32 %s40, 1
        %s136 = scalar_lea.sflag [#allocation3], %s135
        %s137 = sand.u32 %s40, 1
        %s138 = smul.addr %s137, 2
        %s139 = scalar_lea.vmem [#allocation2], %s138
        %p140 = pneg %p53
        %p141 = pneg %p50
        %p142 = pneg %p81
        %p143 = pneg %p78
        %s144 = sand.u32 %s68, 1
        %s145 = scalar_lea.sflag [#allocation4], %s144
        %s146 = sand.u32 %s68, 1
        %s147 = smul.addr %s146, 6
        %s148 = scalar_lea.vmem [#allocation5], %s147
        %v149 = vld [vmem:[%s130] sm:$0x3]
        %150 = vst [vmem:[%s148] sm:$0x3] %v149
        %151 = vst [vmem:[%s148 + $0x2] sm:$0x3] %v149
        %152 = vst [vmem:[%s148 + $0x4] sm:$0x3] %v149
        %s153 = sand.u32 %s68, 1
        %s154 = scalar_lea.sflag [#allocation4], %s153
        %s155 = sand.u32 %s68, 1
        %s156 = smul.addr %s155, 6
        %s157 = scalar_lea.vmem [#allocation5], %s156
        // Predicated region
        $region29: #{tpu_custom_call.1} parent=23 // pred_check
          %p158 = pneg %p78
        $region30: #{tpu_custom_call.1} parent=23 // pred_check_branch
          %160 = sbr.rel (%p158) target = $region32
        $region31: #{tpu_custom_call.1} parent=23 // pred_region
          %s162 = ssub.s32 96, 96
          %163 = vsyncadd %s154, %s162
          %s164 = smul.addr %s22, 3
          %s165 = sadd.s32 %s23, %s164
          %s166 = smul.addr %s165, 32
          %s167 = scalar_lea.hbm %s1, %s166
          %s168 = sshll.u32 %s157, 4
          %s169 = int_to_ptr.vmem [resolvable:$true] %s168
          %174 = dma.vmem_to_hbm [thread:$0]  %s169, 96, %s167, %s154, 32, 32, 2
        $region32: #{tpu_custom_call.1} parent=23 // pred_fallthru
          _
      $region24: #{tpu_custom_call.1} parent=5 // pred_fallthru
        _
      %p175 = scmp.le.s32.totalorder 2, %s13
      // Predicated region
      $region33: #{tpu_custom_call.1} parent=5 // pred_check
        %p176 = pneg %p175
      $region34: #{tpu_custom_call.1} parent=5 // pred_check_branch
        %178 = sbr.rel (%p176) target = $region36
      $region35: #{tpu_custom_call.1} parent=5 // pred_region
        %s179 = ssub.s32 %s13, 2
        // Predicated region
        $region37: #{tpu_custom_call.1} parent=35 // pred_check
          %p180 = pneg %p84
        $region38: #{tpu_custom_call.1} parent=35 // pred_check_branch
          %182 = sbr.rel (%p180) target = $region40
        $region39: #{tpu_custom_call.1} parent=35 // pred_region
          %s183 = sand.u32 %s69, 1
          %s184 = scalar_lea.sflag [#allocation4], %s183
          %s185 = sand.u32 %s69, 1
          %s186 = smul.addr %s185, 6
          %s187 = scalar_lea.vmem [#allocation5], %s186
          %188 = dma.done %s184, 96
        $region40: #{tpu_custom_call.1} parent=35 // pred_fallthru
          _
      $region36: #{tpu_custom_call.1} parent=5 // pred_fallthru
        _
    $region6: #{tpu_custom_call.1} parent=1 // loop_footer
      %s17 = sadd.s32 1, %s13
    $region7: #{tpu_custom_call.1} parent=1 // loop_footer_branch
      %12 = sbr.rel target = $region3
    $region8: #{tpu_custom_call.1} parent=1 // loop_exit
      _
    %189 = vsyncpa [#allocation3], 1
    %s190 = scalar_lea.sflag [#allocation3], 1
    %191 = vsyncpa %s190, 1
    %192 = vsyncpa [#allocation4], 1
    %s193 = scalar_lea.sflag [#allocation4], 1
    %194 = vsyncpa %s193, 1

</llo_original>
